<compile_context>
chip_gen: v6e
topology: v6e:2x2x1
jax: 0.10.0
libtpu: 0.0.40
codegen_flags: <defaults>
</compile_context>

<pallas_src>
import functools

import jax
import jax.numpy as jnp
from jax.experimental import pallas as pl
from jax.experimental.pallas import tpu as pltpu


# ---------------------------------------------------------------------------
# Kernel
# ---------------------------------------------------------------------------
def _critic_head_kernel(x_ref, w_ref, b_ref, eps_ref, out_ref,
                        *, log_std_min: float, log_std_max: float):
    x = x_ref[...]                               # (TB, F) native dtype — no full-tile cast
    w = w_ref[...]                               # (2, F)  row0 = mu, row1 = log_std
    if w.dtype != x.dtype:
        # Cast the tiny (2, F) weight slab instead of the big x tile; the MXU
        # accumulates in f32 via preferred_element_type regardless.
        w = w.astype(x.dtype)
    b = b_ref[...]                               # (2, 1) f32

    # NT contraction (both operands contract on their lane dim) is the MXU-native
    # q @ k^T pattern -> no transpose/relayout of x; batch ends up on lanes.
    z = jax.lax.dot_general(
        w, x,
        dimension_numbers=(((1,), (1,)), ((), ())),
        preferred_element_type=jnp.float32,
    ) + b                                        # (2, TB) f32

    mu = z[0:1, :]                               # (1, TB)
    log_std = jnp.tanh(z[1:2, :])                # f32 epilogue (v5e-safe)
    log_std = log_std_min + 0.5 * (log_std_max - log_std_min) * (log_std + 1.0)
    std = jnp.exp(log_std) + 1e-07               # (1, TB)

    eps = eps_ref[...].astype(jnp.float32)       # (1, TB)
    sample = mu + std * eps                      # reparameterized Normal sample

    # One full-block, lane-dense store: rows = (mu, std, sample).
    out_ref[...] = jnp.concatenate([mu, std, sample], axis=0)


# ---------------------------------------------------------------------------
# Tile / VMEM planning
# ---------------------------------------------------------------------------
def _round_up(x: int, m: int) -> int:
    return ((x + m - 1) // m) * m


@functools.lru_cache(maxsize=None)
def _tpu_vmem_capacity_bytes() -> int:
    try:
        return int(pltpu.get_tpu_info().vmem_capacity_bytes)
    except Exception:
        return 128 * 1024 * 1024      # v5e/v6e default if query unavailable


_TB_CAP = 32768                        # hard cap on the lane (batch-tile) width


def _vmem_plan():
    """(x-buffer budget, base vmem_limit, is_v7x) — generation aware."""
    cap = _tpu_vmem_capacity_bytes()
    is_v7x = cap <= 96 * 1024 * 1024   # v7x: 64 MiB/TC; v5e/v6e: 128 MiB
    if is_v7x:
        return 24 * 1024 * 1024, 36 * 1024 * 1024, True
    return 48 * 1024 * 1024, 64 * 1024 * 1024, False


def _pick_batch_tile(B: int, F: int, itemsize: int):
    """Pick the batch tile (lane width) and the scoped-VMEM limit."""
    budget, limit, is_v7x = _vmem_plan()
    # Per-row VMEM cost: double-buffered native-dtype x tile (lanes pad to 128)
    # plus double-buffered small f32 slabs (eps/out/epilogue temps, ~16 f32/row).
    lane_row = _round_up(max(F, 1), 128) * max(itemsize, 1)
    per_row = 2 * lane_row + 2 * 16 * 4
    tb = (budget // per_row) // 128 * 128
    tb = max(128, min(_TB_CAP, tb))          # multiple of 128 -> lane-dense blocks
    if B <= tb:
        tb = B                               # single full-batch tile, no tail block
    # Make sure the scoped-VMEM limit covers the real footprint (+ headroom),
    # clamped below the generation's physical ceiling.
    footprint = per_row * max(tb, 1) + (2 << 20)
    ceiling = (48 if is_v7x else 100) * 1024 * 1024
    limit = min(max(limit, footprint), ceiling)
    # TODO(synk): for extreme feature_dim where even a 128-row tile exceeds the
    # ceiling, add an F-tiling grid axis with an accumulator.
    return tb, int(limit), is_v7x


# ---------------------------------------------------------------------------
# Parameter fusion (do ONCE per parameter update, outside the hot path)
# ---------------------------------------------------------------------------
def fuse_critic_head_params(mu_w, mu_b, log_std_w, log_std_b):
    """Fuse the two Linear(feature_dim, 1) layers into (2, F) / (2, 1)."""
    F = mu_w.shape[-1]
    w = jnp.concatenate(
        [mu_w.reshape(1, F), log_std_w.reshape(1, F)], axis=0
    ).astype(jnp.float32)                                        # (2, F)
    b = jnp.stack(
        [mu_b.reshape(()), log_std_b.reshape(())]
    ).reshape(2, 1).astype(jnp.float32)                          # (2, 1)
    return w, b


# ---------------------------------------------------------------------------
# Wrapper
# ---------------------------------------------------------------------------
@functools.partial(jax.jit, static_argnames=("log_std_min", "log_std_max"))
def distribute_critic_head(x, w_fused, b_fused, eps,
                           *, log_std_min=-10.0, log_std_max=2.0):
    """Forward pass. Returns (mu, std, sample), each of shape (B,).

    x:        (B, F), any float dtype (kept native; never copied/padded)
    w_fused:  (2, F) f32 from fuse_critic_head_params
    b_fused:  (2, 1) f32
    eps:      (B,) standard-normal noise for rsample
    """
    B, F = x.shape
    tb, vmem_limit, is_v7x = _pick_batch_tile(B, F, x.dtype.itemsize)
    num_tiles = pl.cdiv(B, tb)

    # Independent batch tiles: shard across the two TensorCores on v7x.
    if is_v7x and num_tiles > 1:
        dim_sem = (pltpu.CORE_PARALLEL,)
    else:
        dim_sem = ("parallel",)

    kernel = functools.partial(
        _critic_head_kernel,
        log_std_min=float(log_std_min),
        log_std_max=float(log_std_max),
    )

    out = pl.pallas_call(
        kernel,
        grid=(num_tiles,),
        in_specs=[
            pl.BlockSpec((tb, F), lambda i: (i, 0)),   # x: batch-tiled, pipelined
            pl.BlockSpec((2, F), lambda i: (0, 0)),    # fused weights (resident)
            pl.BlockSpec((2, 1), lambda i: (0, 0)),    # fused biases (resident)
            pl.BlockSpec((1, tb), lambda i: (0, i)),   # eps (lane-major)
        ],
        out_specs=pl.BlockSpec((3, tb), lambda i: (0, i)),  # fused lane-dense slab
        out_shape=jax.ShapeDtypeStruct((3, B), jnp.float32),
        compiler_params=pltpu.CompilerParams(
            dimension_semantics=dim_sem,
            vmem_limit_bytes=vmem_limit,
        ),
    )(x, w_fused, b_fused, eps.reshape(1, B))

    # TODO(synk): the torch module returns a DistributionStep carrying a
    # torch.distributions.Normal object; here we return its (mu, std, sample).
    return out[0], out[1], out[2]


# ---------------------------------------------------------------------------
# Self-test
# ---------------------------------------------------------------------------
if __name__ == "__main__":
    key = jax.random.PRNGKey(0)
    k_x, k_mw, k_mb, k_lw, k_lb, k_eps = jax.random.split(key, 6)

    batch, feature_dim = 8, 32
    log_std_min, log_std_max = -10.0, 2.0

    # Deterministic parameter init, mirroring nn.init.uniform_(-0.003, 0.003).
    mu_w = jax.random.uniform(k_mw, (1, feature_dim), minval=-0.003, maxval=0.003)
    mu_b = jax.random.uniform(k_mb, (1,), minval=-0.003, maxval=0.003)
    log_std_w = jax.random.uniform(k_lw, (1, feature_dim), minval=-0.003, maxval=0.003)
    log_std_b = jax.random.uniform(k_lb, (1,), minval=-0.003, maxval=0.003)

    x = jax.random.normal(k_x, (batch, feature_dim), dtype=jnp.float32)
    eps = jax.random.normal(k_eps, (batch,), dtype=jnp.float32)   # rsample noise

    # Fuse the two tiny Linear layers once (hoisted out of the per-step path).
    w_fused, b_fused = fuse_critic_head_params(mu_w, mu_b, log_std_w, log_std_b)

    mu, std, sample = distribute_critic_head(
        x, w_fused, b_fused, eps,
        log_std_min=log_std_min, log_std_max=log_std_max)
    jax.block_until_ready((mu, std, sample))

    # Pure-JAX reference for correctness.
    mu_ref = (x @ mu_w.T + mu_b)[:, 0]
    ls_ref = jnp.tanh((x @ log_std_w.T + log_std_b)[:, 0])
    ls_ref = log_std_min + 0.5 * (log_std_max - log_std_min) * (ls_ref + 1.0)
    std_ref = jnp.exp(ls_ref) + 1e-07
    sample_ref = mu_ref + std_ref * eps

    assert jnp.allclose(mu, mu_ref, atol=1e-5), "mu mismatch"
    assert jnp.allclose(std, std_ref, atol=1e-5), "std mismatch"
    assert jnp.allclose(sample, sample_ref, atol=1e-5), "sample mismatch"

    print("KERNEL_OK")
</pallas_src>

<mosaic_0001>
module attributes {stable_mosaic.version = 11 : i64} {
  func.func @_critic_head_kernel(%arg0: i32, %arg1: memref<8x32xf32, #tpu.memory_space<vmem>>, %arg2: memref<2x32xf32, #tpu.memory_space<vmem>>, %arg3: memref<2x1xf32, #tpu.memory_space<vmem>>, %arg4: memref<1x8xf32, #tpu.memory_space<vmem>>, %arg5: memref<3x8xf32, #tpu.memory_space<vmem>>) attributes {dimension_semantics = [#tpu.dimension_semantics<parallel>], iteration_bounds = array<i64: 1>, scalar_prefetch = 0 : i64, scratch_operands = 0 : i64, tpu.core_type = #tpu.core_type<tc>, window_params = [{transform_indices = @transform_0, window_bounds = array<i64: 8, 32>}, {pipeline_mode = #tpu.pipeline_mode<synchronous>, transform_indices = @transform_1, window_bounds = array<i64: 2, 32>}, {pipeline_mode = #tpu.pipeline_mode<synchronous>, transform_indices = @transform_2, window_bounds = array<i64: 2, 1>}, {transform_indices = @transform_3, window_bounds = array<i64: 1, 8>}, {transform_indices = @transform_4, window_bounds = array<i64: 3, 8>}]} {
    %c0 = arith.constant 0 : index
    %c0_0 = arith.constant 0 : index
    %0 = vector.load %arg1[%c0, %c0_0] : memref<8x32xf32, #tpu.memory_space<vmem>>, vector<8x32xf32>
    %c0_1 = arith.constant 0 : index
    %c0_2 = arith.constant 0 : index
    %1 = vector.load %arg2[%c0_1, %c0_2] : memref<2x32xf32, #tpu.memory_space<vmem>>, vector<2x32xf32>
    %c0_3 = arith.constant 0 : index
    %c0_4 = arith.constant 0 : index
    %2 = vector.load %arg3[%c0_3, %c0_4] : memref<2x1xf32, #tpu.memory_space<vmem>>, vector<2x1xf32>
    %cst = arith.constant dense<0.000000e+00> : vector<2x8xf32>
    %3 = tpu.matmul %1, %0, %cst {dimension_numbers = #tpu.dot_dimension_numbers<[1], [1], [0], [0], [0, 0, 1, 0], [], []>} : vector<2x32xf32>, vector<8x32xf32>, vector<2x8xf32> -> vector<2x8xf32>
    %4 = vector.broadcast %2 : vector<2x1xf32> to vector<2x8xf32>
    %5 = arith.addf %3, %4 : vector<2x8xf32>
    %6 = vector.extract_strided_slice %5 {offsets = [0, 0], sizes = [1, 8], strides = [1, 1]} : vector<2x8xf32> to vector<1x8xf32>
    %7 = vector.extract_strided_slice %5 {offsets = [1, 0], sizes = [1, 8], strides = [1, 1]} : vector<2x8xf32> to vector<1x8xf32>
    %8 = math.tanh %7 : vector<1x8xf32>
    %cst_5 = arith.constant 1.000000e+00 : f32
    %9 = vector.broadcast %cst_5 : f32 to vector<1x8xf32>
    %10 = arith.addf %8, %9 : vector<1x8xf32>
    %cst_6 = arith.constant 6.000000e+00 : f32
    %11 = vector.broadcast %cst_6 : f32 to vector<1x8xf32>
    %12 = arith.mulf %11, %10 : vector<1x8xf32>
    %cst_7 = arith.constant -1.000000e+01 : f32
    %13 = vector.broadcast %cst_7 : f32 to vector<1x8xf32>
    %14 = arith.addf %13, %12 : vector<1x8xf32>
    %15 = math.exp %14 : vector<1x8xf32>
    %cst_8 = arith.constant 1.000000e-07 : f32
    %16 = vector.broadcast %cst_8 : f32 to vector<1x8xf32>
    %17 = arith.addf %15, %16 : vector<1x8xf32>
    %c0_9 = arith.constant 0 : index
    %c0_10 = arith.constant 0 : index
    %18 = vector.load %arg4[%c0_9, %c0_10] : memref<1x8xf32, #tpu.memory_space<vmem>>, vector<1x8xf32>
    %19 = arith.mulf %17, %18 : vector<1x8xf32>
    %20 = arith.addf %6, %19 : vector<1x8xf32>
    %21 = tpu.concatenate %6, %17, %20 in 0 : vector<1x8xf32>, vector<1x8xf32>, vector<1x8xf32> -> vector<3x8xf32>
    %c0_11 = arith.constant 0 : index
    %c0_12 = arith.constant 0 : index
    %22 = vector.load %arg5[%c0_11, %c0_12] : memref<3x8xf32, #tpu.memory_space<vmem>>, vector<3x8xf32>
    tpu.vector_store %arg5[%c0_11, %c0_12], %21 {strides = array<i32>} : memref<3x8xf32, #tpu.memory_space<vmem>>, vector<3x8xf32>,
    return
  }
  func.func @transform_0(%arg0: i32) -> (i32, i32) {
    %c0_i32 = arith.constant 0 : i32
    %c0_i32_0 = arith.constant 0 : i32
    return %arg0, %c0_i32 : i32, i32
  }
  func.func @transform_1(%arg0: i32) -> (i32, i32) {
    %c0_i32 = arith.constant 0 : i32
    %c0_i32_0 = arith.constant 0 : i32
    %c0_i32_1 = arith.constant 0 : i32
    return %c0_i32, %c0_i32_0 : i32, i32
  }
  func.func @transform_2(%arg0: i32) -> (i32, i32) {
    %c0_i32 = arith.constant 0 : i32
    %c0_i32_0 = arith.constant 0 : i32
    %c0_i32_1 = arith.constant 0 : i32
    return %c0_i32, %c0_i32_0 : i32, i32
  }
  func.func @transform_3(%arg0: i32) -> (i32, i32) {
    %c0_i32 = arith.constant 0 : i32
    %c0_i32_0 = arith.constant 0 : i32
    return %c0_i32, %arg0 : i32, i32
  }
  func.func @transform_4(%arg0: i32) -> (i32, i32) {
    %c0_i32 = arith.constant 0 : i32
    %c0_i32_0 = arith.constant 0 : i32
    return %c0_i32, %arg0 : i32, i32
  }
}

</mosaic_0001>

<llo_original>
// kernel: distribute_critic_head.1
$region0: #{distribute_critic_head.1}
  #allocation0 [shape = 'u32[]', space=smem, size = 0x4, offset = 0x4, fixed_abs, tag = 'smem constant byte address 0x4 - core index']
  #allocation1 [shape = 'u32[144,128]{1,0:T(1,128)}', space=vmem, size = 0x12000, scoped, tag = 'internal scratch']
  %s0 = inlined_call_operand.hbm [shape: f32[8,32], index: 0, kind: input, shape index: {}]
  %s1 = inlined_call_operand.vmem [shape: f32[2,32], index: 1, kind: input, shape index: {}]
  %s2 = inlined_call_operand.vmem [shape: f32[2,1], index: 2, kind: input, shape index: {}]
  %s3 = inlined_call_operand.vmem [shape: f32[1,8], index: 3, kind: input, shape index: {}]
  %s4 = inlined_call_operand.vmem [shape: f32[3,8], index: 4, kind: output, shape index: {}]
  %s5 = sld [smem:[#allocation0]]
  $region30: #{distribute_critic_head.1} parent=0
    _
  %s7 = ssub.s32 1, %s5
  %s8 = scalar_select 0, %s7, %s5
  $region1: #{distribute_critic_head.1} parent=0
    #allocation2 [shape = 'u8[4096]{0}', space=vmem, size = 0x1000, scoped, tag = 'input window, operand 0, single buffered']
    #allocation3 [shape = 's32[1]{0}', space=sflag, size = 0x4, scoped, tag = 'scoped memory for distribute_critic_head.1']
    %9 = vsyncpa [#allocation3], 0
    // Predicated region
    $region2: #{distribute_critic_head.1} parent=1 // pred_check
      _
    $region3: #{distribute_critic_head.1} parent=1 // pred_check_branch
      %11 = sbr.rel (0) target = $region5
    $region4: #{distribute_critic_head.1} parent=1 // pred_region
      %s13 = ssub.s32 128, 128
      %14 = vsyncadd [#allocation3], %s13
      %s16 = sshll.u32 [#allocation2], 4
      %s17 = int_to_ptr.vmem [resolvable:$true] %s16
      %19 = dma.hbm_to_vmem [thread:$0]  %s0, 128, %s17, [#allocation3]
    $region5: #{distribute_critic_head.1} parent=1 // pred_fallthru
      _
    // Predicated region
    $region6: #{distribute_critic_head.1} parent=1 // pred_check
      _
    $region7: #{distribute_critic_head.1} parent=1 // pred_check_branch
      %21 = sbr.rel (0) target = $region9
    $region8: #{distribute_critic_head.1} parent=1 // pred_region
      _
    $region9: #{distribute_critic_head.1} parent=1 // pred_fallthru
      _
    // Predicated region
    $region10: #{distribute_critic_head.1} parent=1 // pred_check
      _
    $region11: #{distribute_critic_head.1} parent=1 // pred_check_branch
      %23 = sbr.rel (0) target = $region13
    $region12: #{distribute_critic_head.1} parent=1 // pred_region
      _
    $region13: #{distribute_critic_head.1} parent=1 // pred_fallthru
      _
    // Predicated region
    $region14: #{distribute_critic_head.1} parent=1 // pred_check
      _
    $region15: #{distribute_critic_head.1} parent=1 // pred_check_branch
      %25 = sbr.rel (0) target = $region17
    $region16: #{distribute_critic_head.1} parent=1 // pred_region
      _
    $region17: #{distribute_critic_head.1} parent=1 // pred_fallthru
      _
    // Predicated region
    $region18: #{distribute_critic_head.1} parent=1 // pred_check
      _
    $region19: #{distribute_critic_head.1} parent=1 // pred_check_branch
      %27 = sbr.rel (0) target = $region21
    $region20: #{distribute_critic_head.1} parent=1 // pred_region
      %28 = dma.done [#allocation3], 128
    $region21: #{distribute_critic_head.1} parent=1 // pred_fallthru
      _
    %v29 = vld [vmem:[#allocation2] sm:$0xff]
    %v30 = vld [vmem:[%s1] sm:$0x3]
    %v31 = vld [vmem:[%s2] sm:$0x3]
    %33 = vset.pattern.permute.xlu0 0
    %34 = vperm.xlu0 %33, %v31
    %v35 = vpop.permute.xlu0 %34
    %vm37 = vcmask 261120
    %v39 = vsel %vm37, %v30, 0
    %v42 = vsel %vm37, %v29, 0
    %44 = vmatprep.subr.mxu0 0.0
    %45 = vmatpush1.xpose.msra.mxu0 0.0
    %46 = vmatprep.subr.mxu0 0.0
    %47 = vmatpush1.xpose.msra.mxu0 0.0
    %48 = vmatprep.subr.mxu0 0.0
    %49 = vmatpush1.xpose.msra.mxu0 0.0
    %50 = vmatprep.subr.mxu0 0.0
    %51 = vmatpush1.xpose.msra.mxu0 0.0
    %52 = vmatprep.subr.mxu0 0.0
    %53 = vmatpush1.xpose.msra.mxu0 0.0
    %54 = vmatprep.subr.mxu0 0.0
    %55 = vmatpush1.xpose.msra.mxu0 0.0
    %56 = vmatprep.subr.mxu0 0.0
    %57 = vmatpush1.xpose.msra.mxu0 0.0
    %58 = vmatprep.subr.mxu0 0.0
    %59 = vmatpush1.xpose.msra.mxu0 0.0
    %60 = vmatprep.subr.mxu0 0.0
    %61 = vmatpush1.xpose.msra.mxu0 0.0
    %62 = vmatprep.subr.mxu0 0.0
    %63 = vmatpush1.xpose.msra.mxu0 0.0
    %64 = vmatprep.subr.mxu0 0.0
    %65 = vmatpush1.xpose.msra.mxu0 0.0
    %66 = vmatprep.subr.mxu0 0.0
    %67 = vmatpush1.xpose.msra.mxu0 0.0
    %68 = vmatprep.subr.mxu0 0.0
    %69 = vmatpush1.xpose.msra.mxu0 0.0
    %70 = vmatprep.subr.mxu0 0.0
    %71 = vmatpush1.xpose.msra.mxu0 0.0
    %72 = vmatprep.subr.mxu0 0.0
    %73 = vmatpush1.xpose.msra.mxu0 0.0
    %74 = vmatprep.subr.mxu0 0.0
    %75 = vmatpush1.xpose.msra.mxu0 %v42
    %76 = vmatprep.subr.mxu0 0.0
    %77 = vmatpush2.xpose.msra.mxu0 0.0
    %78 = vmatprep.subr.mxu0 0.0
    %79 = vmatpush2.xpose.msra.mxu0 0.0
    %80 = vmatprep.subr.mxu0 0.0
    %81 = vmatpush2.xpose.msra.mxu0 0.0
    %82 = vmatprep.subr.mxu0 0.0
    %83 = vmatpush2.xpose.msra.mxu0 0.0
    %84 = vmatprep.subr.mxu0 0.0
    %85 = vmatpush2.xpose.msra.mxu0 0.0
    %86 = vmatprep.subr.mxu0 0.0
    %87 = vmatpush2.xpose.msra.mxu0 0.0
    %88 = vmatprep.subr.mxu0 0.0
    %89 = vmatpush2.xpose.msra.mxu0 0.0
    %90 = vmatprep.subr.mxu0 0.0
    %91 = vmatpush2.xpose.msra.mxu0 0.0
    %92 = vmatprep.subr.mxu0 0.0
    %93 = vmatpush2.xpose.msra.mxu0 0.0
    %94 = vmatprep.subr.mxu0 0.0
    %95 = vmatpush2.xpose.msra.mxu0 0.0
    %96 = vmatprep.subr.mxu0 0.0
    %97 = vmatpush2.xpose.msra.mxu0 0.0
    %98 = vmatprep.subr.mxu0 0.0
    %99 = vmatpush2.xpose.msra.mxu0 0.0
    %100 = vmatprep.subr.mxu0 0.0
    %101 = vmatpush2.xpose.msra.mxu0 0.0
    %102 = vmatprep.subr.mxu0 0.0
    %103 = vmatpush2.xpose.msra.mxu0 0.0
    %104 = vmatprep.subr.mxu0 0.0
    %105 = vmatpush2.xpose.msra.mxu0 0.0
    %106 = vmatprep.subr.mxu0 0.0
    %107 = vmatpush2.xpose.msra.mxu0 0.0
    %108 = vmatprep.mubr.f32.mxu0 0.0
    %109 = vmatmul.mubr.f32.gmra.mxu0 %v39
    %v110 = vpop.f32.mrf.mxu0
    %v111 = vadd.f32 %v35, %v110
    %v112 = vpop.f32.mrf.mxu0
    %113 = vdwg.mxu0
    %v114 = vtanh.pop %v111
    %v115 = vadd.f32 %v114, 1.0
    %v116 = vmul.f32 %v115, 6.0
    %v117 = vadd.f32 %v116, -10.0
    %v118 = vmul.f32 %v117, 1.442695
    %v119 = vpow.pop %v118
    %v120 = vadd.f32 %v119, 1e-07
    %v121 = vld [vmem:[%s3] sm:$0x1]
    %v123 = vlaneseq
    %v124 = vshrl.u32 %v123, 7
    %v125 = vsub.s32 0, %v124
    %v126 = vrot.slane %v121, %v125
    %v128 = vmul.f32 %v120, %v126
    %v130 = vrot.slane %v128, 1
    %v132 = vadd.f32 %v111, %v130
    %v134 = vrot.slane %v132, 6
    %vm136 = vcmask 1040384
    %v137 = vsel %vm136, %v111, %v120
    %vm138 = vcmask 1041408
    %v139 = vsel %vm138, %v137, %v134
    %vm140 = vcmask 59392
    %141 = vst.msk [vmem:[%s4] sm:$0x7] %vm140, %v139
    // Predicated region
    $region22: #{distribute_critic_head.1} parent=1 // pred_check
      _
    $region23: #{distribute_critic_head.1} parent=1 // pred_check_branch
      %143 = sbr.rel (0) target = $region25
    $region24: #{distribute_critic_head.1} parent=1 // pred_region
      _
    $region25: #{distribute_critic_head.1} parent=1 // pred_fallthru
      _
    // Predicated region
    $region26: #{distribute_critic_head.1} parent=1 // pred_check
      _
    $region27: #{distribute_critic_head.1} parent=1 // pred_check_branch
      %145 = sbr.rel (0) target = $region29
    $region28: #{distribute_critic_head.1} parent=1 // pred_region
      _
    $region29: #{distribute_critic_head.1} parent=1 // pred_fallthru
      _
    %146 = vsyncpa [#allocation3], 1

</llo_original>
